<compile_context>
chip_gen: v5e
topology: v5e:2x2
jax: 0.10.0
libtpu: 0.0.40
codegen_flags: <defaults>
</compile_context>

<pallas_src>
import jax
import jax.numpy as jnp
from jax.experimental import pallas as pl
from jax.experimental.pallas import tpu as pltpu


# ----------------------------------------------------------------------------
# Pallas kernel: gather + TeamPlusConf + InnerProduct + HomeField + Gaussian mean
# ----------------------------------------------------------------------------
def score_kernel(
    scal_ref,   # SMEM (3,)  f32: [home_theta, mu_win, mu_los]
    idx_ref,    # VMEM (4, Bt) int32: [win_team, win_conf+nt, los_team, los_conf+nt]
    loc_ref,    # VMEM (2, Bt) f32:   [win_loc ; los_loc]
    tbl_ref,    # VMEM (2*d_pad, n_tot_pad) f32: rows=[off|def], cols=[team;conf]
    out_ref,    # VMEM (2, Bt) f32:   [winner score ; loser score]
):
    two_dp, n_tot_pad = tbl_ref.shape
    d_pad = two_dp // 2
    bt = out_ref.shape[1]

    # (1, Bt) int32 index rows, loaded directly from the ref (cheap strided vld).
    wt = idx_ref[0:1, :]
    wc = idx_ref[1:2, :]
    lt = idx_ref[2:3, :]
    lc = idx_ref[3:4, :]

    # One-hot columns hit BOTH the team row and the (offset) conference row, so
    # one MXU matmul per side performs the gather and the team+conf add.
    # Padded entity rows (>= n_tot) never match an index, so they stay zero.
    ent = jax.lax.broadcasted_iota(jnp.int32, (n_tot_pad, bt), 0)
    win_hot = ((ent == wt) | (ent == wc)).astype(jnp.float32)   # (n_tot_pad, Bt)
    los_hot = ((ent == lt) | (ent == lc)).astype(jnp.float32)

    tbl = tbl_ref[...]                                          # (2*d_pad, n_tot_pad)
    win_t = jnp.dot(tbl, win_hot, preferred_element_type=jnp.float32,
                    precision=jax.lax.Precision.HIGHEST)        # (2*d_pad, Bt)
    los_t = jnp.dot(tbl, los_hot, preferred_element_type=jnp.float32,
                    precision=jax.lax.Precision.HIGHEST)

    # Offense pairs with the opposing defense.  The [off|def] halves are
    # sublane-aligned static slices (d_pad % 8 == 0); zero-padded feature rows
    # contribute nothing.  Reduction runs over sublanes -> lane-dense (1, Bt).
    win_skill = jnp.sum(win_t[:d_pad, :] * los_t[d_pad:, :], axis=0, keepdims=True)
    los_skill = jnp.sum(los_t[:d_pad, :] * win_t[d_pad:, :], axis=0, keepdims=True)

    row = jax.lax.broadcasted_iota(jnp.int32, (2, bt), 0)
    skill = jnp.where(row == 0, win_skill, los_skill)           # (2, Bt): [win ; los]

    # HomeField (additive, scaled by location indicator) + Gaussian mean shift.
    theta = scal_ref[0]
    mu = jnp.where(row == 0, scal_ref[1], scal_ref[2])
    out_ref[...] = skill + theta * loc_ref[...] + mu


# ----------------------------------------------------------------------------
# Parameter construction (deterministic, in-script)
# ----------------------------------------------------------------------------
def _nearest_orthogonal(z):
    # torch: u, _, v = torch.svd(Z); u @ v.T   <=>   jnp: u @ vh
    u, _, vh = jnp.linalg.svd(z, full_matrices=False)
    return u @ vh


def init_params(key, n_team, n_conf, dim):
    k = jax.random.split(key, 4)
    team_off = _nearest_orthogonal(jax.random.normal(k[0], (n_team, dim), jnp.float32))
    team_def = _nearest_orthogonal(jax.random.normal(k[1], (n_team, dim), jnp.float32))
    conf_off = _nearest_orthogonal(jax.random.normal(k[2], (n_conf, dim), jnp.float32))
    conf_def = _nearest_orthogonal(jax.random.normal(k[3], (n_conf, dim), jnp.float32))
    # TODO(synk): HomeField / Gaussian learnable params not specified in source;
    # deterministic placeholders.
    home_w = jnp.array([[1.0]], dtype=jnp.float32)      # HomeField coefficient
    gauss_mu = jnp.zeros((1, 2), dtype=jnp.float32)     # Gaussian mean offset
    return dict(team_off=team_off, team_def=team_def,
                conf_off=conf_off, conf_def=conf_def,
                home_w=home_w, gauss_mu=gauss_mu)


def _round_up(x, m):
    return ((x + m - 1) // m) * m


def pack_params(params):
    """Build the kernel operands ONCE (at init / after each parameter update),
    not inside every forward call."""
    n_team, dim = params["team_off"].shape
    n_conf = params["conf_off"].shape[0]
    n_tot = n_team + n_conf
    d_pad = _round_up(dim, 8)            # sublane-aligned half width
    n_tot_pad = _round_up(n_tot, 8)      # entity axis padded to a sublane tile

    off = jnp.concatenate([params["team_off"], params["conf_off"]], axis=0)   # (n_tot, dim)
    dfn = jnp.concatenate([params["team_def"], params["conf_def"]], axis=0)
    tbl = jnp.zeros((2 * d_pad, n_tot_pad), jnp.float32)
    tbl = tbl.at[:dim, :n_tot].set(off.T.astype(jnp.float32))
    tbl = tbl.at[d_pad:d_pad + dim, :n_tot].set(dfn.T.astype(jnp.float32))

    scal = jnp.concatenate([params["home_w"].reshape(-1),
                            params["gauss_mu"].reshape(-1)]).astype(jnp.float32)  # (3,)
    return tbl, scal, n_team


# ----------------------------------------------------------------------------
# Wrapper: pack per-game inputs lane-dense, pad batch, launch the fused kernel
# ----------------------------------------------------------------------------
def score_model_forward(tbl, scal, n_team, win_team, los_team, win_conf, los_conf,
                        win_loc, los_loc):
    two_dp, n_tot_pad = tbl.shape
    b = win_team.shape[0]

    idx_t = jnp.stack([win_team.astype(jnp.int32),
                       win_conf.astype(jnp.int32) + n_team,
                       los_team.astype(jnp.int32),
                       los_conf.astype(jnp.int32) + n_team], axis=0)    # (4, B)
    loc_t = jnp.stack([win_loc, los_loc], axis=0).astype(jnp.float32)   # (2, B)

    # Batch-block selection:
    #  * blocks up to 1024 games amortize the per-grid-step overhead;
    #  * for large batches pick a block that leaves >= 2 grid steps so the
    #    "parallel" axis can shard across v7x's two TensorCores.
    if b <= 128:
        block_b = max(8, pl.next_power_of_2(b))              # single step, block == array
    else:
        block_b = min(1024, max(128, pl.next_power_of_2(pl.cdiv(b, 2))))
    bp = pl.cdiv(b, block_b) * block_b
    if bp != b:
        idx_t = jnp.pad(idx_t, ((0, 0), (0, bp - b)))
        loc_t = jnp.pad(loc_t, ((0, 0), (0, bp - b)))
    nb = bp // block_b

    out = pl.pallas_call(
        score_kernel,
        out_shape=jax.ShapeDtypeStruct((2, bp), jnp.float32),
        grid=(nb,),
        in_specs=[
            pl.BlockSpec(memory_space=pltpu.MemorySpace.SMEM),        # scal (3,)
            pl.BlockSpec((4, block_b), lambda i: (0, i)),             # idx_t
            pl.BlockSpec((2, block_b), lambda i: (0, i)),             # loc_t
            pl.BlockSpec((two_dp, n_tot_pad), lambda i: (0, 0)),      # packed table (resident)
        ],
        out_specs=pl.BlockSpec((2, block_b), lambda i: (0, i)),
        compiler_params=pltpu.CompilerParams(
            dimension_semantics=("parallel",)),
    )(scal, idx_t, loc_t, tbl)

    # Padded games are garbage columns; slice them off, return (B, 2).
    return out[:, :b].T


# ----------------------------------------------------------------------------
# Pure-JAX reference for correctness
# ----------------------------------------------------------------------------
def score_model_reference(params, win_team, los_team, win_conf, los_conf,
                          win_loc, los_loc):
    win_off = params["team_off"][win_team] + params["conf_off"][win_conf]
    win_def = params["team_def"][win_team] + params["conf_def"][win_conf]
    los_off = params["team_off"][los_team] + params["conf_off"][los_conf]
    los_def = params["team_def"][los_team] + params["conf_def"][los_conf]
    win = jnp.sum(win_off * los_def, axis=-1, keepdims=True)
    los = jnp.sum(los_off * win_def, axis=-1, keepdims=True)
    theta = params["home_w"][0, 0]
    win = win + theta * win_loc.reshape(-1, 1).astype(jnp.float32)
    los = los + theta * los_loc.reshape(-1, 1).astype(jnp.float32)
    skill = jnp.concatenate([win, los], axis=1)
    return skill + params["gauss_mu"]


if __name__ == "__main__":
    n_team, n_conf, dim, batch = 16, 4, 32, 8

    key = jax.random.PRNGKey(0)
    k_param, k_wt, k_lt, k_wc, k_lc, k_wl = jax.random.split(key, 6)

    params = init_params(k_param, n_team, n_conf, dim)
    tbl, scal, nt = pack_params(params)      # built once, reused across calls

    win_team = jax.random.randint(k_wt, (batch,), 0, n_team, dtype=jnp.int32)
    los_team = jax.random.randint(k_lt, (batch,), 0, n_team, dtype=jnp.int32)
    win_conf = jax.random.randint(k_wc, (batch,), 0, n_conf, dtype=jnp.int32)
    los_conf = jax.random.randint(k_lc, (batch,), 0, n_conf, dtype=jnp.int32)
    win_loc = jax.random.bernoulli(k_wl, 0.5, (batch,)).astype(jnp.float32)
    los_loc = (1.0 - win_loc).astype(jnp.float32)

    score = score_model_forward(tbl, scal, nt, win_team, los_team, win_conf,
                                los_conf, win_loc, los_loc)
    score = jax.block_until_ready(score)

    ref = score_model_reference(params, win_team, los_team, win_conf, los_conf,
                                win_loc, los_loc)
    assert score.shape == (batch, 2)
    assert jnp.allclose(score, ref, atol=1e-4, rtol=1e-4)

    print("KERNEL_OK")
</pallas_src>

<mosaic_0001>
module attributes {stable_mosaic.version = 11 : i64} {
  func.func @score_kernel(%arg0: i32, %arg1: memref<3xf32, #tpu.memory_space<smem>>, %arg2: memref<4x8xi32, #tpu.memory_space<vmem>>, %arg3: memref<2x8xf32, #tpu.memory_space<vmem>>, %arg4: memref<64x24xf32, #tpu.memory_space<vmem>>, %arg5: memref<2x8xf32, #tpu.memory_space<vmem>>) attributes {dimension_semantics = [#tpu.dimension_semantics<parallel>], iteration_bounds = array<i64: 1>, scalar_prefetch = 0 : i64, scratch_operands = 0 : i64, tpu.core_type = #tpu.core_type<tc>, window_params = [{transform_indices = @transform_0, window_bounds = array<i64: 3>}, {transform_indices = @transform_1, window_bounds = array<i64: 4, 8>}, {transform_indices = @transform_2, window_bounds = array<i64: 2, 8>}, {pipeline_mode = #tpu.pipeline_mode<synchronous>, transform_indices = @transform_3, window_bounds = array<i64: 64, 24>}, {transform_indices = @transform_4, window_bounds = array<i64: 2, 8>}]} {
    %c0 = arith.constant 0 : index
    %c0_0 = arith.constant 0 : index
    %0 = vector.load %arg2[%c0, %c0_0] : memref<4x8xi32, #tpu.memory_space<vmem>>, vector<1x8xi32>
    %c1 = arith.constant 1 : index
    %c0_1 = arith.constant 0 : index
    %1 = vector.load %arg2[%c1, %c0_1] : memref<4x8xi32, #tpu.memory_space<vmem>>, vector<1x8xi32>
    %c2 = arith.constant 2 : index
    %c0_2 = arith.constant 0 : index
    %2 = vector.load %arg2[%c2, %c0_2] : memref<4x8xi32, #tpu.memory_space<vmem>>, vector<1x8xi32>
    %c3 = arith.constant 3 : index
    %c0_3 = arith.constant 0 : index
    %3 = vector.load %arg2[%c3, %c0_3] : memref<4x8xi32, #tpu.memory_space<vmem>>, vector<1x8xi32>
    %4 = tpu.iota {dimensions = array<i32: 0>} : vector<24x8xi32>
    %5 = vector.broadcast %0 : vector<1x8xi32> to vector<24x8xi32>
    %6 = arith.cmpi eq, %4, %5 : vector<24x8xi32>
    %7 = vector.broadcast %1 : vector<1x8xi32> to vector<24x8xi32>
    %8 = arith.cmpi eq, %4, %7 : vector<24x8xi32>
    %9 = arith.ori %6, %8 : vector<24x8xi1>
    %10 = arith.extui %9 : vector<24x8xi1> to vector<24x8xi32>
    %11 = arith.sitofp %10 : vector<24x8xi32> to vector<24x8xf32>
    %12 = vector.broadcast %2 : vector<1x8xi32> to vector<24x8xi32>
    %13 = arith.cmpi eq, %4, %12 : vector<24x8xi32>
    %14 = vector.broadcast %3 : vector<1x8xi32> to vector<24x8xi32>
    %15 = arith.cmpi eq, %4, %14 : vector<24x8xi32>
    %16 = arith.ori %13, %15 : vector<24x8xi1>
    %17 = arith.extui %16 : vector<24x8xi1> to vector<24x8xi32>
    %18 = arith.sitofp %17 : vector<24x8xi32> to vector<24x8xf32>
    %c0_4 = arith.constant 0 : index
    %c0_5 = arith.constant 0 : index
    %19 = vector.load %arg4[%c0_4, %c0_5] : memref<64x24xf32, #tpu.memory_space<vmem>>, vector<64x24xf32>
    %cst = arith.constant dense<0.000000e+00> : vector<64x8xf32>
    %20 = tpu.matmul %19, %11, %cst {dimension_numbers = #tpu.dot_dimension_numbers<[1], [0], [0], [1], [0, 0, 1, 1], [], []>, precision = #tpu.contract_precision<fp32>} : vector<64x24xf32>, vector<24x8xf32>, vector<64x8xf32> -> vector<64x8xf32>
    %cst_6 = arith.constant dense<0.000000e+00> : vector<64x8xf32>
    %21 = tpu.matmul %19, %18, %cst_6 {dimension_numbers = #tpu.dot_dimension_numbers<[1], [0], [0], [1], [0, 0, 1, 1], [], []>, precision = #tpu.contract_precision<fp32>} : vector<64x24xf32>, vector<24x8xf32>, vector<64x8xf32> -> vector<64x8xf32>
    %22 = vector.extract_strided_slice %20 {offsets = [0, 0], sizes = [32, 8], strides = [1, 1]} : vector<64x8xf32> to vector<32x8xf32>
    %23 = vector.extract_strided_slice %21 {offsets = [32, 0], sizes = [32, 8], strides = [1, 1]} : vector<64x8xf32> to vector<32x8xf32>
    %24 = arith.mulf %22, %23 : vector<32x8xf32>
    %cst_7 = arith.constant dense<0.000000e+00> : vector<8xf32>
    %25 = vector.multi_reduction <add>, %24, %cst_7 [0] : vector<32x8xf32> to vector<8xf32>
    %26 = vector.shape_cast %25 : vector<8xf32> to vector<1x8xf32>
    %27 = vector.extract_strided_slice %21 {offsets = [0, 0], sizes = [32, 8], strides = [1, 1]} : vector<64x8xf32> to vector<32x8xf32>
    %28 = vector.extract_strided_slice %20 {offsets = [32, 0], sizes = [32, 8], strides = [1, 1]} : vector<64x8xf32> to vector<32x8xf32>
    %29 = arith.mulf %27, %28 : vector<32x8xf32>
    %cst_8 = arith.constant dense<0.000000e+00> : vector<8xf32>
    %30 = vector.multi_reduction <add>, %29, %cst_8 [0] : vector<32x8xf32> to vector<8xf32>
    %31 = vector.shape_cast %30 : vector<8xf32> to vector<1x8xf32>
    %32 = tpu.iota {dimensions = array<i32: 0>} : vector<2x8xi32>
    %c0_i32 = arith.constant 0 : i32
    %33 = vector.broadcast %c0_i32 : i32 to vector<2x8xi32>
    %34 = arith.cmpi eq, %32, %33 : vector<2x8xi32>
    %35 = vector.shape_cast %26 : vector<1x8xf32> to vector<1x8xf32>
    %36 = vector.broadcast %35 : vector<1x8xf32> to vector<2x8xf32>
    %37 = vector.shape_cast %31 : vector<1x8xf32> to vector<1x8xf32>
    %38 = vector.broadcast %37 : vector<1x8xf32> to vector<2x8xf32>
    %39 = arith.select %34, %36, %38 : vector<2x8xi1>, vector<2x8xf32>
    %c0_9 = arith.constant 0 : index
    %40 = memref.load %arg1[%c0_9] : memref<3xf32, #tpu.memory_space<smem>>
    %c0_i32_10 = arith.constant 0 : i32
    %41 = vector.broadcast %c0_i32_10 : i32 to vector<2x8xi32>
    %42 = arith.cmpi eq, %32, %41 : vector<2x8xi32>
    %c1_11 = arith.constant 1 : index
    %43 = memref.load %arg1[%c1_11] : memref<3xf32, #tpu.memory_space<smem>>
    %c2_12 = arith.constant 2 : index
    %44 = memref.load %arg1[%c2_12] : memref<3xf32, #tpu.memory_space<smem>>
    %45 = vector.broadcast %43 : f32 to vector<2x8xf32>
    %46 = vector.broadcast %44 : f32 to vector<2x8xf32>
    %47 = arith.select %42, %45, %46 : vector<2x8xi1>, vector<2x8xf32>
    %c0_13 = arith.constant 0 : index
    %c0_14 = arith.constant 0 : index
    %48 = vector.load %arg3[%c0_13, %c0_14] : memref<2x8xf32, #tpu.memory_space<vmem>>, vector<2x8xf32>
    %49 = vector.broadcast %40 : f32 to vector<2x8xf32>
    %50 = arith.mulf %49, %48 : vector<2x8xf32>
    %51 = arith.addf %39, %50 : vector<2x8xf32>
    %52 = arith.addf %51, %47 : vector<2x8xf32>
    %c0_15 = arith.constant 0 : index
    %c0_16 = arith.constant 0 : index
    %53 = vector.load %arg5[%c0_15, %c0_16] : memref<2x8xf32, #tpu.memory_space<vmem>>, vector<2x8xf32>
    tpu.vector_store %arg5[%c0_15, %c0_16], %52 {strides = array<i32>} : memref<2x8xf32, #tpu.memory_space<vmem>>, vector<2x8xf32>,
    return
  }
  func.func @transform_0(%arg0: i32) -> i32 {
    %c0_i32 = arith.constant 0 : i32
    %c0_i32_0 = arith.constant 0 : i32
    return %c0_i32 : i32
  }
  func.func @transform_1(%arg0: i32) -> (i32, i32) {
    %c0_i32 = arith.constant 0 : i32
    %c0_i32_0 = arith.constant 0 : i32
    return %c0_i32, %arg0 : i32, i32
  }
  func.func @transform_2(%arg0: i32) -> (i32, i32) {
    %c0_i32 = arith.constant 0 : i32
    %c0_i32_0 = arith.constant 0 : i32
    return %c0_i32, %arg0 : i32, i32
  }
  func.func @transform_3(%arg0: i32) -> (i32, i32) {
    %c0_i32 = arith.constant 0 : i32
    %c0_i32_0 = arith.constant 0 : i32
    %c0_i32_1 = arith.constant 0 : i32
    return %c0_i32, %c0_i32_0 : i32, i32
  }
  func.func @transform_4(%arg0: i32) -> (i32, i32) {
    %c0_i32 = arith.constant 0 : i32
    %c0_i32_0 = arith.constant 0 : i32
    return %c0_i32, %arg0 : i32, i32
  }
}

</mosaic_0001>

<llo_original>
// kernel: tpu_custom_call.1
$region0: #{tpu_custom_call.1}
  #allocation0 [shape = 'u32[]', space=smem, size = 0x4, offset = 0x4, fixed_abs, tag = 'smem constant byte address 0x4 - core index']
  #allocation1 [shape = 'u32[72,128]{1,0:T(1,128)}', space=vmem, size = 0x9000, scoped, tag = 'internal scratch']
  %s0 = inlined_call_operand.vmem [shape: f32[3], index: 0, kind: input, shape index: {}]
  %s1 = inlined_call_operand.vmem [shape: s32[4,8], index: 1, kind: input, shape index: {}]
  %s2 = inlined_call_operand.vmem [shape: f32[2,8], index: 2, kind: input, shape index: {}]
  %s3 = inlined_call_operand.vmem [shape: f32[64,24], index: 3, kind: input, shape index: {}]
  %s4 = inlined_call_operand.hbm [shape: f32[2,8], index: 4, kind: output, shape index: {}]
  %s5 = sld [smem:[#allocation0]]
  $region30: #{tpu_custom_call.1} parent=0
    _
  %s7 = ssub.s32 1, %s5
  %s8 = scalar_select 0, %s7, %s5
  $region1: #{tpu_custom_call.1} parent=0
    #allocation2 [shape = 'u8[512]{0}', space=smem, size = 0x200, scoped, tag = 'input window, operand 0, single buffered']
    #allocation3 [shape = 's32[1]{0}', space=sflag, size = 0x4, scoped, tag = 'scoped memory for tpu_custom_call.1']
    #allocation4 [shape = 's32[1]{0}', space=sflag, size = 0x4, scoped, tag = 'scoped memory for tpu_custom_call.1']
    #allocation5 [shape = 'u8[1024]{0}', space=vmem, size = 0x400, scoped, tag = 'output window, operand 0, single buffered']
    %9 = vsyncpa [#allocation4], 0
    %10 = vsyncpa [#allocation3], 0
    // Predicated region
    $region2: #{tpu_custom_call.1} parent=1 // pred_check
      _
    $region3: #{tpu_custom_call.1} parent=1 // pred_check_branch
      %12 = sbr.rel (0) target = $region5
    $region4: #{tpu_custom_call.1} parent=1 // pred_region
      %14 = vsyncadd [#allocation4], 0
      %s16 = sshll.u32 %s0, 4
      %s17 = int_to_ptr.vmem [resolvable:$true] %s16
      %19 = dma.vmem_to_smem %s17, 16, [#allocation2], [#allocation4]
    $region5: #{tpu_custom_call.1} parent=1 // pred_fallthru
      _
    // Predicated region
    $region6: #{tpu_custom_call.1} parent=1 // pred_check
      _
    $region7: #{tpu_custom_call.1} parent=1 // pred_check_branch
      %21 = sbr.rel (0) target = $region9
    $region8: #{tpu_custom_call.1} parent=1 // pred_region
      _
    $region9: #{tpu_custom_call.1} parent=1 // pred_fallthru
      _
    // Predicated region
    $region10: #{tpu_custom_call.1} parent=1 // pred_check
      _
    $region11: #{tpu_custom_call.1} parent=1 // pred_check_branch
      %23 = sbr.rel (0) target = $region13
    $region12: #{tpu_custom_call.1} parent=1 // pred_region
      _
    $region13: #{tpu_custom_call.1} parent=1 // pred_fallthru
      _
    // Predicated region
    $region14: #{tpu_custom_call.1} parent=1 // pred_check
      _
    $region15: #{tpu_custom_call.1} parent=1 // pred_check_branch
      %25 = sbr.rel (0) target = $region17
    $region16: #{tpu_custom_call.1} parent=1 // pred_region
      _
    $region17: #{tpu_custom_call.1} parent=1 // pred_fallthru
      _
    // Predicated region
    $region18: #{tpu_custom_call.1} parent=1 // pred_check
      _
    $region19: #{tpu_custom_call.1} parent=1 // pred_check_branch
      %27 = sbr.rel (0) target = $region21
    $region20: #{tpu_custom_call.1} parent=1 // pred_region
      %29 = dma.done [#allocation4], 16
    $region21: #{tpu_custom_call.1} parent=1 // pred_fallthru
      _
    %30 = sfence
    %v31 = vld [vmem:[%s1] sm:$0x1]
    %v32 = vld [vmem:[%s1 + $0x1] sm:$0x1]
    %v33 = vld [vmem:[%s1 + $0x2] sm:$0x1]
    %v34 = vld [vmem:[%s1 + $0x3] sm:$0x1]
    %v35 = vlaneseq
    %v36 = vshrl.u32 %v35, 7
    %v37 = vadd.s32 %v36, 8
    %v38 = vadd.s32 %v36, 16
    %v39 = vperm.slane %v31, 0
    %vm40 = vcmp.eq.s32.totalorder %v36, %v39
    %vm41 = vcmp.eq.s32.totalorder %v37, %v39
    %vm42 = vcmp.eq.s32.totalorder %v38, %v39
    %v43 = vperm.slane %v32, 0
    %vm44 = vcmp.eq.s32.totalorder %v36, %v43
    %vm45 = vcmp.eq.s32.totalorder %v37, %v43
    %vm46 = vcmp.eq.s32.totalorder %v38, %v43
    %vm47 = vmor %vm40, %vm44
    %vm48 = vmor %vm41, %vm45
    %vm49 = vmor %vm42, %vm46
    %v50 = vsel %vm47, 1, 0
    %v51 = vsel %vm48, 1, 0
    %v52 = vsel %vm49, 1, 0
    %v53 = vcvt.s32.f32 %v50
    %v54 = vcvt.s32.f32 %v51
    %v55 = vcvt.s32.f32 %v52
    %v56 = vperm.slane %v33, 0
    %vm57 = vcmp.eq.s32.totalorder %v36, %v56
    %vm58 = vcmp.eq.s32.totalorder %v37, %v56
    %vm59 = vcmp.eq.s32.totalorder %v38, %v56
    %v60 = vperm.slane %v34, 0
    %vm61 = vcmp.eq.s32.totalorder %v36, %v60
    %vm62 = vcmp.eq.s32.totalorder %v37, %v60
    %vm63 = vcmp.eq.s32.totalorder %v38, %v60
    %vm64 = vmor %vm57, %vm61
    %vm65 = vmor %vm58, %vm62
    %vm66 = vmor %vm59, %vm63
    %v67 = vsel %vm64, 1, 0
    %v68 = vsel %vm65, 1, 0
    %v69 = vsel %vm66, 1, 0
    %v70 = vcvt.s32.f32 %v67
    %v71 = vcvt.s32.f32 %v68
    %v72 = vcvt.s32.f32 %v69
    %v73 = vld [vmem:[%s3] sm:$0xff]
    %v74 = vld [vmem:[%s3 + $0x8] sm:$0xff]
    %v75 = vld [vmem:[%s3 + $0x10] sm:$0xff]
    %v76 = vld [vmem:[%s3 + $0x18] sm:$0xff]
    %v77 = vld [vmem:[%s3 + $0x20] sm:$0xff]
    %v78 = vld [vmem:[%s3 + $0x28] sm:$0xff]
    %v79 = vld [vmem:[%s3 + $0x30] sm:$0xff]
    %v80 = vld [vmem:[%s3 + $0x38] sm:$0xff]
    %vm81 = vcmask 195584
    %v83 = vsel %vm81, %v73, 0
    %v86 = vsel %vm81, %v74, 0
    %v89 = vsel %vm81, %v75, 0
    %v92 = vsel %vm81, %v76, 0
    %v95 = vsel %vm81, %v77, 0
    %v98 = vsel %vm81, %v78, 0
    %v101 = vsel %vm81, %v79, 0
    %v104 = vsel %vm81, %v80, 0
    %106 = vmatpush.msra.mxu0 0.0
    %107 = vmatpush.msra.mxu0 0.0
    %108 = vmatpush.msra.mxu0 0.0
    %109 = vmatpush.msra.mxu0 0.0
    %110 = vmatpush.msra.mxu0 0.0
    %111 = vmatpush.msra.mxu0 0.0
    %112 = vmatpush.msra.mxu0 0.0
    %113 = vmatpush.msra.mxu0 0.0
    %114 = vmatpush.msra.mxu0 0.0
    %115 = vmatpush.msra.mxu0 0.0
    %116 = vmatpush.msra.mxu0 0.0
    %117 = vmatpush.msra.mxu0 0.0
    %118 = vmatpush.msra.mxu0 0.0
    %v119 = vand.u32 %v55, 4294901760
    %120 = vmatpush.msra.mxu0 %v119
    %v121 = vand.u32 %v54, 4294901760
    %122 = vmatpush.msra.mxu0 %v121
    %v123 = vand.u32 %v53, 4294901760
    %124 = vmatpush.msra.mxu0 %v123
    %v125 = vand.u32 %v83, 4294901760
    %v126 = vsub.f32 %v83, %v125
    %v127 = vand.u32 %v126, 4294901760
    %v128 = vsub.f32 %v126, %v127
    %v129 = vand.u32 %v128, 4294901760
    %130 = vmatmul.f32.gmra.mxu0 %v129
    %v131 = vpop.f32.mrf.mxu0
    %v132 = vadd.f32 0.0, %v131
    %v133 = vand.u32 %v86, 4294901760
    %v134 = vsub.f32 %v86, %v133
    %v135 = vand.u32 %v134, 4294901760
    %v136 = vsub.f32 %v134, %v135
    %v137 = vand.u32 %v136, 4294901760
    %138 = vmatmul.f32.gmra.mxu0 %v137
    %v139 = vpop.f32.mrf.mxu0
    %v140 = vadd.f32 0.0, %v139
    %v141 = vand.u32 %v89, 4294901760
    %v142 = vsub.f32 %v89, %v141
    %v143 = vand.u32 %v142, 4294901760
    %v144 = vsub.f32 %v142, %v143
    %v145 = vand.u32 %v144, 4294901760
    %146 = vmatmul.f32.gmra.mxu0 %v145
    %v147 = vpop.f32.mrf.mxu0
    %v148 = vadd.f32 0.0, %v147
    %v149 = vand.u32 %v92, 4294901760
    %v150 = vsub.f32 %v92, %v149
    %v151 = vand.u32 %v150, 4294901760
    %v152 = vsub.f32 %v150, %v151
    %v153 = vand.u32 %v152, 4294901760
    %154 = vmatmul.f32.gmra.mxu0 %v153
    %v155 = vpop.f32.mrf.mxu0
    %v156 = vadd.f32 0.0, %v155
    %v157 = vand.u32 %v95, 4294901760
    %v158 = vsub.f32 %v95, %v157
    %v159 = vand.u32 %v158, 4294901760
    %v160 = vsub.f32 %v158, %v159
    %v161 = vand.u32 %v160, 4294901760
    %162 = vmatmul.f32.gmra.mxu0 %v161
    %v163 = vpop.f32.mrf.mxu0
    %v164 = vadd.f32 0.0, %v163
    %v165 = vand.u32 %v98, 4294901760
    %v166 = vsub.f32 %v98, %v165
    %v167 = vand.u32 %v166, 4294901760
    %v168 = vsub.f32 %v166, %v167
    %v169 = vand.u32 %v168, 4294901760
    %170 = vmatmul.f32.gmra.mxu0 %v169
    %v171 = vpop.f32.mrf.mxu0
    %v172 = vadd.f32 0.0, %v171
    %v173 = vand.u32 %v101, 4294901760
    %v174 = vsub.f32 %v101, %v173
    %v175 = vand.u32 %v174, 4294901760
    %v176 = vsub.f32 %v174, %v175
    %v177 = vand.u32 %v176, 4294901760
    %178 = vmatmul.f32.gmra.mxu0 %v177
    %v179 = vpop.f32.mrf.mxu0
    %v180 = vadd.f32 0.0, %v179
    %v181 = vand.u32 %v104, 4294901760
    %v182 = vsub.f32 %v104, %v181
    %v183 = vand.u32 %v182, 4294901760
    %v184 = vsub.f32 %v182, %v183
    %v185 = vand.u32 %v184, 4294901760
    %186 = vmatmul.f32.gmra.mxu0 %v185
    %v187 = vpop.f32.mrf.mxu0
    %v188 = vadd.f32 0.0, %v187
    %189 = vdwg.mxu0
    %190 = vmatpush.msra.mxu0 0.0
    %191 = vmatpush.msra.mxu0 0.0
    %192 = vmatpush.msra.mxu0 0.0
    %193 = vmatpush.msra.mxu0 0.0
    %194 = vmatpush.msra.mxu0 0.0
    %195 = vmatpush.msra.mxu0 0.0
    %196 = vmatpush.msra.mxu0 0.0
    %197 = vmatpush.msra.mxu0 0.0
    %198 = vmatpush.msra.mxu0 0.0
    %199 = vmatpush.msra.mxu0 0.0
    %200 = vmatpush.msra.mxu0 0.0
    %201 = vmatpush.msra.mxu0 0.0
    %202 = vmatpush.msra.mxu0 0.0
    %v203 = vand.u32 %v55, 4294901760
    %v204 = vsub.f32 %v55, %v203
    %v205 = vand.u32 %v204, 4294901760
    %v206 = vsub.f32 %v204, %v205
    %v207 = vand.u32 %v206, 4294901760
    %208 = vmatpush.msra.mxu0 %v207
    %v209 = vand.u32 %v54, 4294901760
    %v210 = vsub.f32 %v54, %v209
    %v211 = vand.u32 %v210, 4294901760
    %v212 = vsub.f32 %v210, %v211
    %v213 = vand.u32 %v212, 4294901760
    %214 = vmatpush.msra.mxu0 %v213
    %v215 = vand.u32 %v53, 4294901760
    %v216 = vsub.f32 %v53, %v215
    %v217 = vand.u32 %v216, 4294901760
    %v218 = vsub.f32 %v216, %v217
    %v219 = vand.u32 %v218, 4294901760
    %220 = vmatpush.msra.mxu0 %v219
    %v221 = vand.u32 %v83, 4294901760
    %222 = vmatmul.f32.gmra.mxu0 %v221
    %v223 = vpop.f32.mrf.mxu0
    %v224 = vadd.f32 %v132, %v223
    %v225 = vand.u32 %v86, 4294901760
    %226 = vmatmul.f32.gmra.mxu0 %v225
    %v227 = vpop.f32.mrf.mxu0
    %v228 = vadd.f32 %v140, %v227
    %v229 = vand.u32 %v89, 4294901760
    %230 = vmatmul.f32.gmra.mxu0 %v229
    %v231 = vpop.f32.mrf.mxu0
    %v232 = vadd.f32 %v148, %v231
    %v233 = vand.u32 %v92, 4294901760
    %234 = vmatmul.f32.gmra.mxu0 %v233
    %v235 = vpop.f32.mrf.mxu0
    %v236 = vadd.f32 %v156, %v235
    %v237 = vand.u32 %v95, 4294901760
    %238 = vmatmul.f32.gmra.mxu0 %v237
    %v239 = vpop.f32.mrf.mxu0
    %v240 = vadd.f32 %v164, %v239
    %v241 = vand.u32 %v98, 4294901760
    %242 = vmatmul.f32.gmra.mxu0 %v241
    %v243 = vpop.f32.mrf.mxu0
    %v244 = vadd.f32 %v172, %v243
    %v245 = vand.u32 %v101, 4294901760
    %246 = vmatmul.f32.gmra.mxu0 %v245
    %v247 = vpop.f32.mrf.mxu0
    %v248 = vadd.f32 %v180, %v247
    %v249 = vand.u32 %v104, 4294901760
    %250 = vmatmul.f32.gmra.mxu0 %v249
    %v251 = vpop.f32.mrf.mxu0
    %v252 = vadd.f32 %v188, %v251
    %253 = vdwg.mxu0
    %254 = vmatpush.msra.mxu0 0.0
    %255 = vmatpush.msra.mxu0 0.0
    %256 = vmatpush.msra.mxu0 0.0
    %257 = vmatpush.msra.mxu0 0.0
    %258 = vmatpush.msra.mxu0 0.0
    %259 = vmatpush.msra.mxu0 0.0
    %260 = vmatpush.msra.mxu0 0.0
    %261 = vmatpush.msra.mxu0 0.0
    %262 = vmatpush.msra.mxu0 0.0
    %263 = vmatpush.msra.mxu0 0.0
    %264 = vmatpush.msra.mxu0 0.0
    %265 = vmatpush.msra.mxu0 0.0
    %266 = vmatpush.msra.mxu0 0.0
    %v267 = vand.u32 %v55, 4294901760
    %v268 = vsub.f32 %v55, %v267
    %269 = vmatpush.msra.mxu0 %v268
    %v270 = vand.u32 %v54, 4294901760
    %v271 = vsub.f32 %v54, %v270
    %272 = vmatpush.msra.mxu0 %v271
    %v273 = vand.u32 %v53, 4294901760
    %v274 = vsub.f32 %v53, %v273
    %275 = vmatpush.msra.mxu0 %v274
    %v276 = vand.u32 %v83, 4294901760
    %v277 = vsub.f32 %v83, %v276
    %278 = vmatmul.f32.gmra.mxu0 %v277
    %v279 = vpop.f32.mrf.mxu0
    %v280 = vadd.f32 %v224, %v279
    %v281 = vand.u32 %v86, 4294901760
    %v282 = vsub.f32 %v86, %v281
    %283 = vmatmul.f32.gmra.mxu0 %v282
    %v284 = vpop.f32.mrf.mxu0
    %v285 = vadd.f32 %v228, %v284
    %v286 = vand.u32 %v89, 4294901760
    %v287 = vsub.f32 %v89, %v286
    %288 = vmatmul.f32.gmra.mxu0 %v287
    %v289 = vpop.f32.mrf.mxu0
    %v290 = vadd.f32 %v232, %v289
    %v291 = vand.u32 %v92, 4294901760
    %v292 = vsub.f32 %v92, %v291
    %293 = vmatmul.f32.gmra.mxu0 %v292
    %v294 = vpop.f32.mrf.mxu0
    %v295 = vadd.f32 %v236, %v294
    %v296 = vand.u32 %v95, 4294901760
    %v297 = vsub.f32 %v95, %v296
    %298 = vmatmul.f32.gmra.mxu0 %v297
    %v299 = vpop.f32.mrf.mxu0
    %v300 = vadd.f32 %v240, %v299
    %v301 = vand.u32 %v98, 4294901760
    %v302 = vsub.f32 %v98, %v301
    %303 = vmatmul.f32.gmra.mxu0 %v302
    %v304 = vpop.f32.mrf.mxu0
    %v305 = vadd.f32 %v244, %v304
    %v306 = vand.u32 %v101, 4294901760
    %v307 = vsub.f32 %v101, %v306
    %308 = vmatmul.f32.gmra.mxu0 %v307
    %v309 = vpop.f32.mrf.mxu0
    %v310 = vadd.f32 %v248, %v309
    %v311 = vand.u32 %v104, 4294901760
    %v312 = vsub.f32 %v104, %v311
    %313 = vmatmul.f32.gmra.mxu0 %v312
    %v314 = vpop.f32.mrf.mxu0
    %v315 = vadd.f32 %v252, %v314
    %316 = vdwg.mxu0
    %317 = vmatpush.msra.mxu0 0.0
    %318 = vmatpush.msra.mxu0 0.0
    %319 = vmatpush.msra.mxu0 0.0
    %320 = vmatpush.msra.mxu0 0.0
    %321 = vmatpush.msra.mxu0 0.0
    %322 = vmatpush.msra.mxu0 0.0
    %323 = vmatpush.msra.mxu0 0.0
    %324 = vmatpush.msra.mxu0 0.0
    %325 = vmatpush.msra.mxu0 0.0
    %326 = vmatpush.msra.mxu0 0.0
    %327 = vmatpush.msra.mxu0 0.0
    %328 = vmatpush.msra.mxu0 0.0
    %329 = vmatpush.msra.mxu0 0.0
    %v330 = vand.u32 %v55, 4294901760
    %331 = vmatpush.msra.mxu0 %v330
    %v332 = vand.u32 %v54, 4294901760
    %333 = vmatpush.msra.mxu0 %v332
    %v334 = vand.u32 %v53, 4294901760
    %335 = vmatpush.msra.mxu0 %v334
    %v336 = vand.u32 %v83, 4294901760
    %v337 = vsub.f32 %v83, %v336
    %v338 = vand.u32 %v337, 4294901760
    %339 = vmatmul.f32.gmra.mxu0 %v338
    %v340 = vpop.f32.mrf.mxu0
    %v341 = vadd.f32 %v280, %v340
    %v342 = vand.u32 %v86, 4294901760
    %v343 = vsub.f32 %v86, %v342
    %v344 = vand.u32 %v343, 4294901760
    %345 = vmatmul.f32.gmra.mxu0 %v344
    %v346 = vpop.f32.mrf.mxu0
    %v347 = vadd.f32 %v285, %v346
    %v348 = vand.u32 %v89, 4294901760
    %v349 = vsub.f32 %v89, %v348
    %v350 = vand.u32 %v349, 4294901760
    %351 = vmatmul.f32.gmra.mxu0 %v350
    %v352 = vpop.f32.mrf.mxu0
    %v353 = vadd.f32 %v290, %v352
    %v354 = vand.u32 %v92, 4294901760
    %v355 = vsub.f32 %v92, %v354
    %v356 = vand.u32 %v355, 4294901760
    %357 = vmatmul.f32.gmra.mxu0 %v356
    %v358 = vpop.f32.mrf.mxu0
    %v359 = vadd.f32 %v295, %v358
    %v360 = vand.u32 %v95, 4294901760
    %v361 = vsub.f32 %v95, %v360
    %v362 = vand.u32 %v361, 4294901760
    %363 = vmatmul.f32.gmra.mxu0 %v362
    %v364 = vpop.f32.mrf.mxu0
    %v365 = vadd.f32 %v300, %v364
    %v366 = vand.u32 %v98, 4294901760
    %v367 = vsub.f32 %v98, %v366
    %v368 = vand.u32 %v367, 4294901760
    %369 = vmatmul.f32.gmra.mxu0 %v368
    %v370 = vpop.f32.mrf.mxu0
    %v371 = vadd.f32 %v305, %v370
    %v372 = vand.u32 %v101, 4294901760
    %v373 = vsub.f32 %v101, %v372
    %v374 = vand.u32 %v373, 4294901760
    %375 = vmatmul.f32.gmra.mxu0 %v374
    %v376 = vpop.f32.mrf.mxu0
    %v377 = vadd.f32 %v310, %v376
    %v378 = vand.u32 %v104, 4294901760
    %v379 = vsub.f32 %v104, %v378
    %v380 = vand.u32 %v379, 4294901760
    %381 = vmatmul.f32.gmra.mxu0 %v380
    %v382 = vpop.f32.mrf.mxu0
    %v383 = vadd.f32 %v315, %v382
    %384 = vdwg.mxu0
    %385 = vmatpush.msra.mxu0 0.0
    %386 = vmatpush.msra.mxu0 0.0
    %387 = vmatpush.msra.mxu0 0.0
    %388 = vmatpush.msra.mxu0 0.0
    %389 = vmatpush.msra.mxu0 0.0
    %390 = vmatpush.msra.mxu0 0.0
    %391 = vmatpush.msra.mxu0 0.0
    %392 = vmatpush.msra.mxu0 0.0
    %393 = vmatpush.msra.mxu0 0.0
    %394 = vmatpush.msra.mxu0 0.0
    %395 = vmatpush.msra.mxu0 0.0
    %396 = vmatpush.msra.mxu0 0.0
    %397 = vmatpush.msra.mxu0 0.0
    %v398 = vand.u32 %v55, 4294901760
    %v399 = vsub.f32 %v55, %v398
    %v400 = vand.u32 %v399, 4294901760
    %401 = vmatpush.msra.mxu0 %v400
    %v402 = vand.u32 %v54, 4294901760
    %v403 = vsub.f32 %v54, %v402
    %v404 = vand.u32 %v403, 4294901760
    %405 = vmatpush.msra.mxu0 %v404
    %v406 = vand.u32 %v53, 4294901760
    %v407 = vsub.f32 %v53, %v406
    %v408 = vand.u32 %v407, 4294901760
    %409 = vmatpush.msra.mxu0 %v408
    %v410 = vand.u32 %v83, 4294901760
    %411 = vmatmul.f32.gmra.mxu0 %v410
    %v412 = vpop.f32.mrf.mxu0
    %v413 = vadd.f32 %v341, %v412
    %v414 = vand.u32 %v86, 4294901760
    %415 = vmatmul.f32.gmra.mxu0 %v414
    %v416 = vpop.f32.mrf.mxu0
    %v417 = vadd.f32 %v347, %v416
    %v418 = vand.u32 %v89, 4294901760
    %419 = vmatmul.f32.gmra.mxu0 %v418
    %v420 = vpop.f32.mrf.mxu0
    %v421 = vadd.f32 %v353, %v420
    %v422 = vand.u32 %v92, 4294901760
    %423 = vmatmul.f32.gmra.mxu0 %v422
    %v424 = vpop.f32.mrf.mxu0
    %v425 = vadd.f32 %v359, %v424
    %v426 = vand.u32 %v95, 4294901760
    %427 = vmatmul.f32.gmra.mxu0 %v426
    %v428 = vpop.f32.mrf.mxu0
    %v429 = vadd.f32 %v365, %v428
    %v430 = vand.u32 %v98, 4294901760
    %431 = vmatmul.f32.gmra.mxu0 %v430
    %v432 = vpop.f32.mrf.mxu0
    %v433 = vadd.f32 %v371, %v432
    %v434 = vand.u32 %v101, 4294901760
    %435 = vmatmul.f32.gmra.mxu0 %v434
    %v436 = vpop.f32.mrf.mxu0
    %v437 = vadd.f32 %v377, %v436
    %v438 = vand.u32 %v104, 4294901760
    %439 = vmatmul.f32.gmra.mxu0 %v438
    %v440 = vpop.f32.mrf.mxu0
    %v441 = vadd.f32 %v383, %v440
    %442 = vdwg.mxu0
    %443 = vmatpush.msra.mxu0 0.0
    %444 = vmatpush.msra.mxu0 0.0
    %445 = vmatpush.msra.mxu0 0.0
    %446 = vmatpush.msra.mxu0 0.0
    %447 = vmatpush.msra.mxu0 0.0
    %448 = vmatpush.msra.mxu0 0.0
    %449 = vmatpush.msra.mxu0 0.0
    %450 = vmatpush.msra.mxu0 0.0
    %451 = vmatpush.msra.mxu0 0.0
    %452 = vmatpush.msra.mxu0 0.0
    %453 = vmatpush.msra.mxu0 0.0
    %454 = vmatpush.msra.mxu0 0.0
    %455 = vmatpush.msra.mxu0 0.0
    %v456 = vand.u32 %v55, 4294901760
    %457 = vmatpush.msra.mxu0 %v456
    %v458 = vand.u32 %v54, 4294901760
    %459 = vmatpush.msra.mxu0 %v458
    %v460 = vand.u32 %v53, 4294901760
    %461 = vmatpush.msra.mxu0 %v460
    %v462 = vand.u32 %v83, 4294901760
    %463 = vmatmul.f32.gmra.mxu0 %v462
    %v464 = vpop.f32.mrf.mxu0
    %v465 = vadd.f32 %v413, %v464
    %v466 = vand.u32 %v86, 4294901760
    %467 = vmatmul.f32.gmra.mxu0 %v466
    %v468 = vpop.f32.mrf.mxu0
    %v469 = vadd.f32 %v417, %v468
    %v470 = vand.u32 %v89, 4294901760
    %471 = vmatmul.f32.gmra.mxu0 %v470
    %v472 = vpop.f32.mrf.mxu0
    %v473 = vadd.f32 %v421, %v472
    %v474 = vand.u32 %v92, 4294901760
    %475 = vmatmul.f32.gmra.mxu0 %v474
    %v476 = vpop.f32.mrf.mxu0
    %v477 = vadd.f32 %v425, %v476
    %v478 = vand.u32 %v95, 4294901760
    %479 = vmatmul.f32.gmra.mxu0 %v478
    %v480 = vpop.f32.mrf.mxu0
    %v481 = vadd.f32 %v429, %v480
    %v482 = vand.u32 %v98, 4294901760
    %483 = vmatmul.f32.gmra.mxu0 %v482
    %v484 = vpop.f32.mrf.mxu0
    %v485 = vadd.f32 %v433, %v484
    %v486 = vand.u32 %v101, 4294901760
    %487 = vmatmul.f32.gmra.mxu0 %v486
    %v488 = vpop.f32.mrf.mxu0
    %v489 = vadd.f32 %v437, %v488
    %v490 = vand.u32 %v104, 4294901760
    %491 = vmatmul.f32.gmra.mxu0 %v490
    %v492 = vpop.f32.mrf.mxu0
    %v493 = vadd.f32 %v441, %v492
    %494 = vdwg.mxu0
    %495 = vmatpush.msra.mxu0 0.0
    %496 = vmatpush.msra.mxu0 0.0
    %497 = vmatpush.msra.mxu0 0.0
    %498 = vmatpush.msra.mxu0 0.0
    %499 = vmatpush.msra.mxu0 0.0
    %500 = vmatpush.msra.mxu0 0.0
    %501 = vmatpush.msra.mxu0 0.0
    %502 = vmatpush.msra.mxu0 0.0
    %503 = vmatpush.msra.mxu0 0.0
    %504 = vmatpush.msra.mxu0 0.0
    %505 = vmatpush.msra.mxu0 0.0
    %506 = vmatpush.msra.mxu0 0.0
    %507 = vmatpush.msra.mxu0 0.0
    %v508 = vand.u32 %v72, 4294901760
    %509 = vmatpush.msra.mxu0 %v508
    %v510 = vand.u32 %v71, 4294901760
    %511 = vmatpush.msra.mxu0 %v510
    %v512 = vand.u32 %v70, 4294901760
    %513 = vmatpush.msra.mxu0 %v512
    %v514 = vand.u32 %v83, 4294901760
    %v515 = vsub.f32 %v83, %v514
    %v516 = vand.u32 %v515, 4294901760
    %v517 = vsub.f32 %v515, %v516
    %v518 = vand.u32 %v517, 4294901760
    %519 = vmatmul.f32.gmra.mxu0 %v518
    %v520 = vpop.f32.mrf.mxu0
    %v521 = vadd.f32 0.0, %v520
    %v522 = vand.u32 %v86, 4294901760
    %v523 = vsub.f32 %v86, %v522
    %v524 = vand.u32 %v523, 4294901760
    %v525 = vsub.f32 %v523, %v524
    %v526 = vand.u32 %v525, 4294901760
    %527 = vmatmul.f32.gmra.mxu0 %v526
    %v528 = vpop.f32.mrf.mxu0
    %v529 = vadd.f32 0.0, %v528
    %v530 = vand.u32 %v89, 4294901760
    %v531 = vsub.f32 %v89, %v530
    %v532 = vand.u32 %v531, 4294901760
    %v533 = vsub.f32 %v531, %v532
    %v534 = vand.u32 %v533, 4294901760
    %535 = vmatmul.f32.gmra.mxu0 %v534
    %v536 = vpop.f32.mrf.mxu0
    %v537 = vadd.f32 0.0, %v536
    %v538 = vand.u32 %v92, 4294901760
    %v539 = vsub.f32 %v92, %v538
    %v540 = vand.u32 %v539, 4294901760
    %v541 = vsub.f32 %v539, %v540
    %v542 = vand.u32 %v541, 4294901760
    %543 = vmatmul.f32.gmra.mxu0 %v542
    %v544 = vpop.f32.mrf.mxu0
    %v545 = vadd.f32 0.0, %v544
    %v546 = vand.u32 %v95, 4294901760
    %v547 = vsub.f32 %v95, %v546
    %v548 = vand.u32 %v547, 4294901760
    %v549 = vsub.f32 %v547, %v548
    %v550 = vand.u32 %v549, 4294901760
    %551 = vmatmul.f32.gmra.mxu0 %v550
    %v552 = vpop.f32.mrf.mxu0
    %v553 = vadd.f32 0.0, %v552
    %v554 = vand.u32 %v98, 4294901760
    %v555 = vsub.f32 %v98, %v554
    %v556 = vand.u32 %v555, 4294901760
    %v557 = vsub.f32 %v555, %v556
    %v558 = vand.u32 %v557, 4294901760
    %559 = vmatmul.f32.gmra.mxu0 %v558
    %v560 = vpop.f32.mrf.mxu0
    %v561 = vadd.f32 0.0, %v560
    %v562 = vand.u32 %v101, 4294901760
    %v563 = vsub.f32 %v101, %v562
    %v564 = vand.u32 %v563, 4294901760
    %v565 = vsub.f32 %v563, %v564
    %v566 = vand.u32 %v565, 4294901760
    %567 = vmatmul.f32.gmra.mxu0 %v566
    %v568 = vpop.f32.mrf.mxu0
    %v569 = vadd.f32 0.0, %v568
    %v570 = vand.u32 %v104, 4294901760
    %v571 = vsub.f32 %v104, %v570
    %v572 = vand.u32 %v571, 4294901760
    %v573 = vsub.f32 %v571, %v572
    %v574 = vand.u32 %v573, 4294901760
    %575 = vmatmul.f32.gmra.mxu0 %v574
    %v576 = vpop.f32.mrf.mxu0
    %v577 = vadd.f32 0.0, %v576
    %578 = vdwg.mxu0
    %579 = vmatpush.msra.mxu0 0.0
    %580 = vmatpush.msra.mxu0 0.0
    %581 = vmatpush.msra.mxu0 0.0
    %582 = vmatpush.msra.mxu0 0.0
    %583 = vmatpush.msra.mxu0 0.0
    %584 = vmatpush.msra.mxu0 0.0
    %585 = vmatpush.msra.mxu0 0.0
    %586 = vmatpush.msra.mxu0 0.0
    %587 = vmatpush.msra.mxu0 0.0
    %588 = vmatpush.msra.mxu0 0.0
    %589 = vmatpush.msra.mxu0 0.0
    %590 = vmatpush.msra.mxu0 0.0
    %591 = vmatpush.msra.mxu0 0.0
    %v592 = vand.u32 %v72, 4294901760
    %v593 = vsub.f32 %v72, %v592
    %v594 = vand.u32 %v593, 4294901760
    %v595 = vsub.f32 %v593, %v594
    %v596 = vand.u32 %v595, 4294901760
    %597 = vmatpush.msra.mxu0 %v596
    %v598 = vand.u32 %v71, 4294901760
    %v599 = vsub.f32 %v71, %v598
    %v600 = vand.u32 %v599, 4294901760
    %v601 = vsub.f32 %v599, %v600
    %v602 = vand.u32 %v601, 4294901760
    %603 = vmatpush.msra.mxu0 %v602
    %v604 = vand.u32 %v70, 4294901760
    %v605 = vsub.f32 %v70, %v604
    %v606 = vand.u32 %v605, 4294901760
    %v607 = vsub.f32 %v605, %v606
    %v608 = vand.u32 %v607, 4294901760
    %609 = vmatpush.msra.mxu0 %v608
    %v610 = vand.u32 %v83, 4294901760
    %611 = vmatmul.f32.gmra.mxu0 %v610
    %v612 = vpop.f32.mrf.mxu0
    %v613 = vadd.f32 %v521, %v612
    %v614 = vand.u32 %v86, 4294901760
    %615 = vmatmul.f32.gmra.mxu0 %v614
    %v616 = vpop.f32.mrf.mxu0
    %v617 = vadd.f32 %v529, %v616
    %v618 = vand.u32 %v89, 4294901760
    %619 = vmatmul.f32.gmra.mxu0 %v618
    %v620 = vpop.f32.mrf.mxu0
    %v621 = vadd.f32 %v537, %v620
    %v622 = vand.u32 %v92, 4294901760
    %623 = vmatmul.f32.gmra.mxu0 %v622
    %v624 = vpop.f32.mrf.mxu0
    %v625 = vadd.f32 %v545, %v624
    %v626 = vand.u32 %v95, 4294901760
    %627 = vmatmul.f32.gmra.mxu0 %v626
    %v628 = vpop.f32.mrf.mxu0
    %v629 = vadd.f32 %v553, %v628
    %v630 = vand.u32 %v98, 4294901760
    %631 = vmatmul.f32.gmra.mxu0 %v630
    %v632 = vpop.f32.mrf.mxu0
    %v633 = vadd.f32 %v561, %v632
    %v634 = vand.u32 %v101, 4294901760
    %635 = vmatmul.f32.gmra.mxu0 %v634
    %v636 = vpop.f32.mrf.mxu0
    %v637 = vadd.f32 %v569, %v636
    %v638 = vand.u32 %v104, 4294901760
    %639 = vmatmul.f32.gmra.mxu0 %v638
    %v640 = vpop.f32.mrf.mxu0
    %v641 = vadd.f32 %v577, %v640
    %642 = vdwg.mxu0
    %643 = vmatpush.msra.mxu0 0.0
    %644 = vmatpush.msra.mxu0 0.0
    %645 = vmatpush.msra.mxu0 0.0
    %646 = vmatpush.msra.mxu0 0.0
    %647 = vmatpush.msra.mxu0 0.0
    %648 = vmatpush.msra.mxu0 0.0
    %649 = vmatpush.msra.mxu0 0.0
    %650 = vmatpush.msra.mxu0 0.0
    %651 = vmatpush.msra.mxu0 0.0
    %652 = vmatpush.msra.mxu0 0.0
    %653 = vmatpush.msra.mxu0 0.0
    %654 = vmatpush.msra.mxu0 0.0
    %655 = vmatpush.msra.mxu0 0.0
    %v656 = vand.u32 %v72, 4294901760
    %v657 = vsub.f32 %v72, %v656
    %658 = vmatpush.msra.mxu0 %v657
    %v659 = vand.u32 %v71, 4294901760
    %v660 = vsub.f32 %v71, %v659
    %661 = vmatpush.msra.mxu0 %v660
    %v662 = vand.u32 %v70, 4294901760
    %v663 = vsub.f32 %v70, %v662
    %664 = vmatpush.msra.mxu0 %v663
    %v665 = vand.u32 %v83, 4294901760
    %v666 = vsub.f32 %v83, %v665
    %667 = vmatmul.f32.gmra.mxu0 %v666
    %v668 = vpop.f32.mrf.mxu0
    %v669 = vadd.f32 %v613, %v668
    %v670 = vand.u32 %v86, 4294901760
    %v671 = vsub.f32 %v86, %v670
    %672 = vmatmul.f32.gmra.mxu0 %v671
    %v673 = vpop.f32.mrf.mxu0
    %v674 = vadd.f32 %v617, %v673
    %v675 = vand.u32 %v89, 4294901760
    %v676 = vsub.f32 %v89, %v675
    %677 = vmatmul.f32.gmra.mxu0 %v676
    %v678 = vpop.f32.mrf.mxu0
    %v679 = vadd.f32 %v621, %v678
    %v680 = vand.u32 %v92, 4294901760
    %v681 = vsub.f32 %v92, %v680
    %682 = vmatmul.f32.gmra.mxu0 %v681
    %v683 = vpop.f32.mrf.mxu0
    %v684 = vadd.f32 %v625, %v683
    %v685 = vand.u32 %v95, 4294901760
    %v686 = vsub.f32 %v95, %v685
    %687 = vmatmul.f32.gmra.mxu0 %v686
    %v688 = vpop.f32.mrf.mxu0
    %v689 = vadd.f32 %v629, %v688
    %v690 = vand.u32 %v98, 4294901760
    %v691 = vsub.f32 %v98, %v690
    %692 = vmatmul.f32.gmra.mxu0 %v691
    %v693 = vpop.f32.mrf.mxu0
    %v694 = vadd.f32 %v633, %v693
    %v695 = vand.u32 %v101, 4294901760
    %v696 = vsub.f32 %v101, %v695
    %697 = vmatmul.f32.gmra.mxu0 %v696
    %v698 = vpop.f32.mrf.mxu0
    %v699 = vadd.f32 %v637, %v698
    %v700 = vand.u32 %v104, 4294901760
    %v701 = vsub.f32 %v104, %v700
    %702 = vmatmul.f32.gmra.mxu0 %v701
    %v703 = vpop.f32.mrf.mxu0
    %v704 = vadd.f32 %v641, %v703
    %705 = vdwg.mxu0
    %706 = vmatpush.msra.mxu0 0.0
    %707 = vmatpush.msra.mxu0 0.0
    %708 = vmatpush.msra.mxu0 0.0
    %709 = vmatpush.msra.mxu0 0.0
    %710 = vmatpush.msra.mxu0 0.0
    %711 = vmatpush.msra.mxu0 0.0
    %712 = vmatpush.msra.mxu0 0.0
    %713 = vmatpush.msra.mxu0 0.0
    %714 = vmatpush.msra.mxu0 0.0
    %715 = vmatpush.msra.mxu0 0.0
    %716 = vmatpush.msra.mxu0 0.0
    %717 = vmatpush.msra.mxu0 0.0
    %718 = vmatpush.msra.mxu0 0.0
    %v719 = vand.u32 %v72, 4294901760
    %720 = vmatpush.msra.mxu0 %v719
    %v721 = vand.u32 %v71, 4294901760
    %722 = vmatpush.msra.mxu0 %v721
    %v723 = vand.u32 %v70, 4294901760
    %724 = vmatpush.msra.mxu0 %v723
    %v725 = vand.u32 %v83, 4294901760
    %v726 = vsub.f32 %v83, %v725
    %v727 = vand.u32 %v726, 4294901760
    %728 = vmatmul.f32.gmra.mxu0 %v727
    %v729 = vpop.f32.mrf.mxu0
    %v730 = vadd.f32 %v669, %v729
    %v731 = vand.u32 %v86, 4294901760
    %v732 = vsub.f32 %v86, %v731
    %v733 = vand.u32 %v732, 4294901760
    %734 = vmatmul.f32.gmra.mxu0 %v733
    %v735 = vpop.f32.mrf.mxu0
    %v736 = vadd.f32 %v674, %v735
    %v737 = vand.u32 %v89, 4294901760
    %v738 = vsub.f32 %v89, %v737
    %v739 = vand.u32 %v738, 4294901760
    %740 = vmatmul.f32.gmra.mxu0 %v739
    %v741 = vpop.f32.mrf.mxu0
    %v742 = vadd.f32 %v679, %v741
    %v743 = vand.u32 %v92, 4294901760
    %v744 = vsub.f32 %v92, %v743
    %v745 = vand.u32 %v744, 4294901760
    %746 = vmatmul.f32.gmra.mxu0 %v745
    %v747 = vpop.f32.mrf.mxu0
    %v748 = vadd.f32 %v684, %v747
    %v749 = vand.u32 %v95, 4294901760
    %v750 = vsub.f32 %v95, %v749
    %v751 = vand.u32 %v750, 4294901760
    %752 = vmatmul.f32.gmra.mxu0 %v751
    %v753 = vpop.f32.mrf.mxu0
    %v754 = vadd.f32 %v689, %v753
    %v755 = vand.u32 %v98, 4294901760
    %v756 = vsub.f32 %v98, %v755
    %v757 = vand.u32 %v756, 4294901760
    %758 = vmatmul.f32.gmra.mxu0 %v757
    %v759 = vpop.f32.mrf.mxu0
    %v760 = vadd.f32 %v694, %v759
    %v761 = vand.u32 %v101, 4294901760
    %v762 = vsub.f32 %v101, %v761
    %v763 = vand.u32 %v762, 4294901760
    %764 = vmatmul.f32.gmra.mxu0 %v763
    %v765 = vpop.f32.mrf.mxu0
    %v766 = vadd.f32 %v699, %v765
    %v767 = vand.u32 %v104, 4294901760
    %v768 = vsub.f32 %v104, %v767
    %v769 = vand.u32 %v768, 4294901760
    %770 = vmatmul.f32.gmra.mxu0 %v769
    %v771 = vpop.f32.mrf.mxu0
    %v772 = vadd.f32 %v704, %v771
    %773 = vdwg.mxu0
    %774 = vmatpush.msra.mxu0 0.0
    %775 = vmatpush.msra.mxu0 0.0
    %776 = vmatpush.msra.mxu0 0.0
    %777 = vmatpush.msra.mxu0 0.0
    %778 = vmatpush.msra.mxu0 0.0
    %779 = vmatpush.msra.mxu0 0.0
    %780 = vmatpush.msra.mxu0 0.0
    %781 = vmatpush.msra.mxu0 0.0
    %782 = vmatpush.msra.mxu0 0.0
    %783 = vmatpush.msra.mxu0 0.0
    %784 = vmatpush.msra.mxu0 0.0
    %785 = vmatpush.msra.mxu0 0.0
    %786 = vmatpush.msra.mxu0 0.0
    %v787 = vand.u32 %v72, 4294901760
    %v788 = vsub.f32 %v72, %v787
    %v789 = vand.u32 %v788, 4294901760
    %790 = vmatpush.msra.mxu0 %v789
    %v791 = vand.u32 %v71, 4294901760
    %v792 = vsub.f32 %v71, %v791
    %v793 = vand.u32 %v792, 4294901760
    %794 = vmatpush.msra.mxu0 %v793
    %v795 = vand.u32 %v70, 4294901760
    %v796 = vsub.f32 %v70, %v795
    %v797 = vand.u32 %v796, 4294901760
    %798 = vmatpush.msra.mxu0 %v797
    %v799 = vand.u32 %v83, 4294901760
    %800 = vmatmul.f32.gmra.mxu0 %v799
    %v801 = vpop.f32.mrf.mxu0
    %v802 = vadd.f32 %v730, %v801
    %v803 = vand.u32 %v86, 4294901760
    %804 = vmatmul.f32.gmra.mxu0 %v803
    %v805 = vpop.f32.mrf.mxu0
    %v806 = vadd.f32 %v736, %v805
    %v807 = vand.u32 %v89, 4294901760
    %808 = vmatmul.f32.gmra.mxu0 %v807
    %v809 = vpop.f32.mrf.mxu0
    %v810 = vadd.f32 %v742, %v809
    %v811 = vand.u32 %v92, 4294901760
    %812 = vmatmul.f32.gmra.mxu0 %v811
    %v813 = vpop.f32.mrf.mxu0
    %v814 = vadd.f32 %v748, %v813
    %v815 = vand.u32 %v95, 4294901760
    %816 = vmatmul.f32.gmra.mxu0 %v815
    %v817 = vpop.f32.mrf.mxu0
    %v818 = vadd.f32 %v754, %v817
    %v819 = vand.u32 %v98, 4294901760
    %820 = vmatmul.f32.gmra.mxu0 %v819
    %v821 = vpop.f32.mrf.mxu0
    %v822 = vadd.f32 %v760, %v821
    %v823 = vand.u32 %v101, 4294901760
    %824 = vmatmul.f32.gmra.mxu0 %v823
    %v825 = vpop.f32.mrf.mxu0
    %v826 = vadd.f32 %v766, %v825
    %v827 = vand.u32 %v104, 4294901760
    %828 = vmatmul.f32.gmra.mxu0 %v827
    %v829 = vpop.f32.mrf.mxu0
    %v830 = vadd.f32 %v772, %v829
    %831 = vdwg.mxu0
    %832 = vmatpush.msra.mxu0 0.0
    %833 = vmatpush.msra.mxu0 0.0
    %834 = vmatpush.msra.mxu0 0.0
    %835 = vmatpush.msra.mxu0 0.0
    %836 = vmatpush.msra.mxu0 0.0
    %837 = vmatpush.msra.mxu0 0.0
    %838 = vmatpush.msra.mxu0 0.0
    %839 = vmatpush.msra.mxu0 0.0
    %840 = vmatpush.msra.mxu0 0.0
    %841 = vmatpush.msra.mxu0 0.0
    %842 = vmatpush.msra.mxu0 0.0
    %843 = vmatpush.msra.mxu0 0.0
    %844 = vmatpush.msra.mxu0 0.0
    %v845 = vand.u32 %v72, 4294901760
    %846 = vmatpush.msra.mxu0 %v845
    %v847 = vand.u32 %v71, 4294901760
    %848 = vmatpush.msra.mxu0 %v847
    %v849 = vand.u32 %v70, 4294901760
    %850 = vmatpush.msra.mxu0 %v849
    %v851 = vand.u32 %v83, 4294901760
    %852 = vmatmul.f32.gmra.mxu0 %v851
    %v853 = vpop.f32.mrf.mxu0
    %v854 = vadd.f32 %v802, %v853
    %v855 = vand.u32 %v86, 4294901760
    %856 = vmatmul.f32.gmra.mxu0 %v855
    %v857 = vpop.f32.mrf.mxu0
    %v858 = vadd.f32 %v806, %v857
    %v859 = vand.u32 %v89, 4294901760
    %860 = vmatmul.f32.gmra.mxu0 %v859
    %v861 = vpop.f32.mrf.mxu0
    %v862 = vadd.f32 %v810, %v861
    %v863 = vand.u32 %v92, 4294901760
    %864 = vmatmul.f32.gmra.mxu0 %v863
    %v865 = vpop.f32.mrf.mxu0
    %v866 = vadd.f32 %v814, %v865
    %v867 = vand.u32 %v95, 4294901760
    %868 = vmatmul.f32.gmra.mxu0 %v867
    %v869 = vpop.f32.mrf.mxu0
    %v870 = vadd.f32 %v818, %v869
    %v871 = vand.u32 %v98, 4294901760
    %872 = vmatmul.f32.gmra.mxu0 %v871
    %v873 = vpop.f32.mrf.mxu0
    %v874 = vadd.f32 %v822, %v873
    %v875 = vand.u32 %v101, 4294901760
    %876 = vmatmul.f32.gmra.mxu0 %v875
    %v877 = vpop.f32.mrf.mxu0
    %v878 = vadd.f32 %v826, %v877
    %v879 = vand.u32 %v104, 4294901760
    %880 = vmatmul.f32.gmra.mxu0 %v879
    %v881 = vpop.f32.mrf.mxu0
    %v882 = vadd.f32 %v830, %v881
    %883 = vdwg.mxu0
    %v884 = vmul.f32 %v465, %v870
    %v885 = vmul.f32 %v469, %v874
    %v886 = vmul.f32 %v473, %v878
    %v887 = vmul.f32 %v477, %v882
    %vm888 = vcmask 64512
    %v889 = vsel %vm888, %v884, 0.0
    %v890 = vsel %vm888, %v885, 0.0
    %v891 = vadd.f32 %v889, %v890
    %v892 = vsel %vm888, %v886, 0.0
    %v893 = vadd.f32 %v891, %v892
    %v894 = vsel %vm888, %v887, 0.0
    %v895 = vadd.f32 %v893, %v894
    %v896 = vrot.slane %v895, 4
    %v897 = vadd.f32 %v895, %v896
    %v898 = vrot.slane %v897, 2
    %v899 = vadd.f32 %v897, %v898
    %v900 = vrot.slane %v899, 1
    %v901 = vadd.f32 %v899, %v900
    %v902 = vmul.f32 %v854, %v481
    %v903 = vmul.f32 %v858, %v485
    %v904 = vmul.f32 %v862, %v489
    %v905 = vmul.f32 %v866, %v493
    %v906 = vsel %vm888, %v902, 0.0
    %v907 = vsel %vm888, %v903, 0.0
    %v908 = vadd.f32 %v906, %v907
    %v909 = vsel %vm888, %v904, 0.0
    %v910 = vadd.f32 %v908, %v909
    %v911 = vsel %vm888, %v905, 0.0
    %v912 = vadd.f32 %v910, %v911
    %v913 = vrot.slane %v912, 4
    %v914 = vadd.f32 %v912, %v913
    %v915 = vrot.slane %v914, 2
    %v916 = vadd.f32 %v914, %v915
    %v917 = vrot.slane %v916, 1
    %v918 = vadd.f32 %v916, %v917
    %vm919 = vcmp.eq.s32.totalorder %v36, 0
    %v920 = vsel %vm919, %v901, %v918
    %s921 = sld [smem:[#allocation2]]
    %s922 = sld [smem:[#allocation2 + $0x1]]
    %s923 = sld [smem:[#allocation2 + $0x2]]
    %v924 = vstv %s922
    %v925 = vstv %s923
    %v926 = vsel %vm919, %v924, %v925
    %v927 = vld [vmem:[%s2] sm:$0x3]
    %v928 = vstv %s921
    %v929 = vmul.f32 %v928, %v927
    %v930 = vadd.f32 %v920, %v929
    %v931 = vadd.f32 %v930, %v926
    %vm932 = vcmask 58368
    %933 = vst.msk [vmem:[#allocation5] sm:$0x3] %vm932, %v931
    // Predicated region
    $region22: #{tpu_custom_call.1} parent=1 // pred_check
      _
    $region23: #{tpu_custom_call.1} parent=1 // pred_check_branch
      %935 = sbr.rel (0) target = $region25
    $region24: #{tpu_custom_call.1} parent=1 // pred_region
      %937 = vsyncadd [#allocation3], 0
      %s939 = sshll.u32 [#allocation5], 4
      %s940 = int_to_ptr.vmem [resolvable:$true] %s939
      %s941 = sshll.u32 %s4, 4
      %s942 = int_to_ptr.hbm [resolvable:$true] %s941
      %944 = dma.vmem_to_hbm [thread:$0]  %s940, 32, %s942, [#allocation3]
    $region25: #{tpu_custom_call.1} parent=1 // pred_fallthru
      _
    // Predicated region
    $region26: #{tpu_custom_call.1} parent=1 // pred_check
      _
    $region27: #{tpu_custom_call.1} parent=1 // pred_check_branch
      %946 = sbr.rel (0) target = $region29
    $region28: #{tpu_custom_call.1} parent=1 // pred_region
      %948 = dma.done [#allocation3], 32
    $region29: #{tpu_custom_call.1} parent=1 // pred_fallthru
      _
    %949 = vsyncpa [#allocation3], 1
    %950 = vsyncpa [#allocation4], 1

</llo_original>
